<compile_context>
chip_gen: v7x
topology: tpu7x:2x2x1
jax: 0.10.0
libtpu: 0.0.40
codegen_flags: <defaults>
</compile_context>

<pallas_src>
import functools

import jax
import jax.numpy as jnp
from jax.experimental import pallas as pl
from jax.experimental.pallas import tpu as pltpu


def _round_up(x, m):
    return ((x + m - 1) // m) * m


def _linear_kernel(x_ref, w_ref, b_ref, o_ref):
    """One (tm, tn) output tile.  x:(tm,K)  w:(tn,K)  b:(1,tn) -> o:(tm,tn)."""
    acc = jax.lax.dot_general(
        x_ref[...],
        w_ref[...],
        dimension_numbers=(((1,), (1,)), ((), ())),  # contract last axis of both
        preferred_element_type=jnp.float32,
    )
    # TODO(synk): for int8 (v5e/v6e) / fp8 (v7x) quantized-weight streaming,
    # fold per-output-channel scales into this epilogue: acc * scale + bias.
    o_ref[...] = (acc + b_ref[...].astype(jnp.float32)).astype(o_ref.dtype)


def _tpu_config():
    """Generation-aware VMEM budget / TensorCore-count heuristics."""
    try:
        cap = int(pltpu.get_tpu_info().vmem_capacity_bytes)
    except Exception:
        cap = 64 << 20  # conservative (v7x-like) fallback
    if cap >= (100 << 20):
        # v5e / v6e: 128 MiB physical VMEM, 1 TensorCore per chip.
        return dict(vmem_budget=64 << 20, vmem_cap=cap, two_tc=False, tn_max=2048)
    # v7x-like: 64 MiB physical VMEM per TC, 2 TensorCores per chip.
    return dict(vmem_budget=36 << 20, vmem_cap=cap, two_tc=True, tn_max=1024)


def _choose_tiles(B, N, K, x_bytes, w_bytes, out_bytes, cfg):
    """Pick (tm, tn, weight-buffer-depth) with full K in one block."""
    # Sublane multiple depends on packing (8 for f32, 16 for bf16, 32 for int8).
    sub = max(8, 32 // max(x_bytes, 1), 32 // max(out_bytes, 1))

    # Balanced M tiling: as many <=256-row blocks as needed, sized evenly, so
    # e.g. B=260 uses 2x136-row tiles instead of one 256 + one mostly-padded.
    m_blocks = -(-B // 256)
    tm = min(_round_up(-(-B // m_blocks), sub), _round_up(B, sub))

    K_lane = _round_up(K, 128)  # VMEM lane padding (accounting only)
    n128 = _round_up(N, 128)

    tn = min(cfg["tn_max"], n128)
    # Only on 2-TC chips: make sure there are >=2 parallel grid blocks so both
    # TensorCores get work.  Single-TC parts keep the bigger weight tile.
    if (cfg["two_tc"] and n128 > 128
            and -(-B // tm) < 2 and -(-n128 // tn) < 2):
        tn = _round_up(-(-n128 // 2), 128)

    def vmem_needed(tm_, tn_, w_bufs):
        return (2 * tm_ * K_lane * x_bytes          # x tile (double-buffered)
                + w_bufs * tn_ * K_lane * w_bytes   # streamed weight tile
                + 2 * tn_ * 4                       # bias row
                + 2 * tm_ * tn_ * out_bytes)        # output tile

    budget = cfg["vmem_budget"]
    while vmem_needed(tm, tn, 2) > budget and tn > 128:
        tn = _round_up(tn // 2, 128)
    while vmem_needed(tm, tn, 2) > budget and tm > sub:
        tm = _round_up(tm // 2, sub)

    # Deeper buffering on the streamed weight only: it is the critical DMA.
    # Gate on budget and on there actually being a long N stream to hide.
    n_steps = -(-n128 // tn)
    w_bufs = 3 if (n_steps >= 4 and vmem_needed(tm, tn, 3) <= budget) else 2

    return tm, tn, w_bufs, vmem_needed(tm, tn, w_bufs)


def _weight_spec(tn, K, w_bufs):
    """BlockSpec for the streamed (N, K) weight; deeper pipelining if asked."""
    idx = lambda i, j: (j, 0)
    if w_bufs > 2:
        try:
            return pl.BlockSpec((tn, K), idx, pipeline_mode=pl.Buffered(w_bufs))
        except Exception:
            pass  # older jax without pipeline_mode: fall back to double-buffer
    return pl.BlockSpec((tn, K), idx)


@functools.partial(jax.jit, static_argnames=("out_dtype",))
def softmax_head_forward(x, weight, bias, label=None, *, out_dtype=None):
    """out = x @ weight.T + bias (PyTorch F.linear), via a Pallas TPU kernel.

    x:      (B, in_features)
    weight: (out_features, in_features)  -- nn.Linear layout, NOT transposed.
            Store it bf16-at-rest (see init_params) to halve the dominant
            weight HBM stream; accumulation is always float32.
    bias:   (out_features,)
    label:  unused (mirrors the PyTorch forward signature)
    out_dtype: output dtype; defaults to promote_types(x, weight).
    """
    del label  # not used by the computation (matches the reference forward)
    B, K = x.shape
    N, K2 = weight.shape
    assert K == K2, "in_features mismatch"

    if out_dtype is None:
        out_dtype = jnp.promote_types(x.dtype, weight.dtype)

    x_bytes = jnp.dtype(x.dtype).itemsize
    w_bytes = jnp.dtype(weight.dtype).itemsize
    out_bytes = jnp.dtype(out_dtype).itemsize

    cfg = _tpu_config()
    tm, tn, w_bufs, needed = _choose_tiles(B, N, K, x_bytes, w_bytes,
                                           out_bytes, cfg)

    # No padding anywhere: ragged edge blocks are handled by Pallas (clamped
    # reads, masked out-of-bounds writes).  Garbage read from ragged weight /
    # bias / x lanes only ever lands in output lanes that are never written.
    grid = (pl.cdiv(B, tm), pl.cdiv(N, tn))
    b2d = bias.reshape(1, N)

    # Scoped VMEM: the working set already counts all buffer copies, so just
    # add fixed headroom (no 1.5x double-counting); stay under physical VMEM.
    vmem_limit = max(int(needed) + (4 << 20), 16 << 20)
    vmem_limit = min(vmem_limit, cfg["vmem_cap"] - (8 << 20))

    cost = pl.CostEstimate(
        flops=2 * B * N * K,
        transcendentals=0,
        bytes_accessed=(N * K * w_bytes + B * K * x_bytes
                        + B * N * out_bytes + N * 4),
    )

    # i outer, j inner: the x tile (index_map depends only on i) is DMA'd once
    # per batch tile and stays resident in VMEM while the weight streams over j.
    # TODO(synk): if a v5e bundle dump shows XLU pressure from the NT feed,
    # store the weight pre-transposed as (K, N) at init time and switch the
    # kernel to a plain NN dot (one-time layout change, not per call).
    out = pl.pallas_call(
        _linear_kernel,
        out_shape=jax.ShapeDtypeStruct((B, N), out_dtype),
        grid_spec=pltpu.PrefetchScalarGridSpec(
            num_scalar_prefetch=0,
            grid=grid,
            in_specs=[
                pl.BlockSpec((tm, K), lambda i, j: (i, 0)),   # x (resident over j)
                _weight_spec(tn, K, w_bufs),                  # weight (N, K) streamed
                pl.BlockSpec((1, tn), lambda i, j: (0, j)),   # bias
            ],
            out_specs=pl.BlockSpec((tm, tn), lambda i, j: (i, j)),
        ),
        compiler_params=pltpu.CompilerParams(
            dimension_semantics=("parallel", "parallel"),
            vmem_limit_bytes=vmem_limit,
        ),
        cost_estimate=cost,
    )(x, weight, b2d)

    return out


def init_params(key, in_features, out_features, dtype=jnp.float32):
    """Deterministic xavier_uniform_ weight + zero bias (matches __init__).

    Pass dtype=jnp.bfloat16 to store the weight bf16-at-rest (recommended for
    serving: halves the streamed weight bytes on v5e/v6e/v7x, f32 accumulate).
    """
    bound = (6.0 / (in_features + out_features)) ** 0.5
    weight = jax.random.uniform(
        key, (out_features, in_features), jnp.float32, minval=-bound, maxval=bound
    ).astype(dtype)
    bias = jnp.zeros((out_features,), jnp.float32)
    return weight, bias


if __name__ == "__main__":
    in_features = 256
    out_features = 512
    batch = 8

    key = jax.random.PRNGKey(0)
    kx, kw = jax.random.split(key)

    x = jax.random.normal(kx, (batch, in_features), jnp.float32)
    # label is an argument of forward() but unused in the computation.
    label = jnp.zeros((batch,), jnp.int32)

    weight, bias = init_params(kw, in_features, out_features)  # f32 reference params
    ref = x @ weight.T + bias

    # 1) Exactness check with f32-at-rest params (matches the PyTorch module).
    out = softmax_head_forward(x, weight, bias, label)
    out = jax.block_until_ready(out)
    assert out.shape == (batch, out_features)
    assert jnp.allclose(out, ref, atol=1e-4, rtol=1e-4)

    # 2) bf16-at-rest streaming path (cast ONCE outside the per-call jit):
    #    halves the dominant weight HBM stream; accumulation stays f32.
    x_bf16 = x.astype(jnp.bfloat16)
    w_bf16 = weight.astype(jnp.bfloat16)
    out_bf16 = softmax_head_forward(x_bf16, w_bf16, bias, label,
                                    out_dtype=jnp.float32)
    out_bf16 = jax.block_until_ready(out_bf16)
    assert out_bf16.shape == (batch, out_features)
    assert jnp.allclose(out_bf16, ref, atol=5e-2, rtol=5e-2)

    # TODO(synk): the multi-GPU `device_id` model-parallel branch is a sharding
    # detail, not a math change; it is intentionally not replicated here.
    # TODO(synk): int8 (v5e/v6e) / fp8 (v7x) quantized-weight streaming with
    # per-channel scales in the epilogue is a further 2x bytes win; not wired
    # up here to keep the demo exact.

    print("KERNEL_OK")
</pallas_src>

<mosaic_0001>
module attributes {stable_mosaic.version = 11 : i64} {
  func.func @_linear_kernel(%arg0: i32, %arg1: i32, %arg2: memref<8x256xf32, #tpu.memory_space<vmem>>, %arg3: memref<256x256xf32, #tpu.memory_space<vmem>>, %arg4: memref<1x256xf32, #tpu.memory_space<vmem>>, %arg5: memref<8x256xf32, #tpu.memory_space<vmem>>) attributes {dimension_semantics = [#tpu.dimension_semantics<parallel>, #tpu.dimension_semantics<parallel>], iteration_bounds = array<i64: 1, 2>, scalar_prefetch = 0 : i64, scratch_operands = 0 : i64, tpu.core_type = #tpu.core_type<tc>, window_params = [{transform_indices = @transform_0, window_bounds = array<i64: 8, 256>}, {transform_indices = @transform_1, window_bounds = array<i64: 256, 256>}, {transform_indices = @transform_2, window_bounds = array<i64: 1, 256>}, {transform_indices = @transform_3, window_bounds = array<i64: 8, 256>}]} {
    %c0 = arith.constant 0 : index
    %c0_0 = arith.constant 0 : index
    %0 = vector.load %arg2[%c0, %c0_0] : memref<8x256xf32, #tpu.memory_space<vmem>>, vector<8x256xf32>
    %c0_1 = arith.constant 0 : index
    %c0_2 = arith.constant 0 : index
    %1 = vector.load %arg3[%c0_1, %c0_2] : memref<256x256xf32, #tpu.memory_space<vmem>>, vector<256x256xf32>
    %cst = arith.constant dense<0.000000e+00> : vector<8x256xf32>
    %2 = tpu.matmul %0, %1, %cst {dimension_numbers = #tpu.dot_dimension_numbers<[1], [1], [0], [0], [0, 0, 1, 0], [], []>} : vector<8x256xf32>, vector<256x256xf32>, vector<8x256xf32> -> vector<8x256xf32>
    %c0_3 = arith.constant 0 : index
    %c0_4 = arith.constant 0 : index
    %3 = vector.load %arg4[%c0_3, %c0_4] : memref<1x256xf32, #tpu.memory_space<vmem>>, vector<1x256xf32>
    %4 = vector.broadcast %3 : vector<1x256xf32> to vector<8x256xf32>
    %5 = arith.addf %2, %4 : vector<8x256xf32>
    %c0_5 = arith.constant 0 : index
    %c0_6 = arith.constant 0 : index
    %6 = vector.load %arg5[%c0_5, %c0_6] : memref<8x256xf32, #tpu.memory_space<vmem>>, vector<8x256xf32>
    tpu.vector_store %arg5[%c0_5, %c0_6], %5 {strides = array<i32>} : memref<8x256xf32, #tpu.memory_space<vmem>>, vector<8x256xf32>,
    return
  }
  func.func @transform_0(%arg0: i32, %arg1: i32) -> (i32, i32) {
    %c0_i32 = arith.constant 0 : i32
    %c0_i32_0 = arith.constant 0 : i32
    return %arg0, %c0_i32 : i32, i32
  }
  func.func @transform_1(%arg0: i32, %arg1: i32) -> (i32, i32) {
    %c0_i32 = arith.constant 0 : i32
    %c0_i32_0 = arith.constant 0 : i32
    return %arg1, %c0_i32 : i32, i32
  }
  func.func @transform_2(%arg0: i32, %arg1: i32) -> (i32, i32) {
    %c0_i32 = arith.constant 0 : i32
    %c0_i32_0 = arith.constant 0 : i32
    return %c0_i32, %arg1 : i32, i32
  }
  func.func @transform_3(%arg0: i32, %arg1: i32) -> (i32, i32) {
    %c0_i32 = arith.constant 0 : i32
    return %arg0, %arg1 : i32, i32
  }
}

</mosaic_0001>

<llo_original>
// kernel: softmax_head_forward.1
$region0: #{softmax_head_forward.1}
  #allocation0 [shape = 'u32[]', space=smem, size = 0x4, offset = 0x4, fixed_abs, tag = 'smem constant byte address 0x4 - core index']
  #allocation1 [shape = 'u32[144,128]{1,0:T(1,128)}', space=vmem, size = 0x12000, scoped, tag = 'internal scratch']
  %s0 = inlined_call_operand.hbm [shape: f32[8,256], index: 0, kind: input, shape index: {}]
  %s1 = inlined_call_operand.hbm [shape: f32[512,256], index: 1, kind: input, shape index: {}]
  %s2 = inlined_call_operand.vmem [shape: f32[1,512], index: 2, kind: input, shape index: {}]
  %s3 = inlined_call_operand.hbm [shape: f32[8,512], index: 3, kind: output, shape index: {}]
  %s4 = sld [smem:[#allocation0]]
  $region53: #{softmax_head_forward.1} parent=0
    _
  %s6 = ssub.s32 1, %s4
  %s7 = scalar_select 0, %s6, %s4
  $region1: #{softmax_head_forward.1} parent=0
    #allocation2 [shape = 'u8[8192]{0}', space=vmem, size = 0x2000, scoped, tag = 'input window, operand 0, single buffered']
    #allocation3 [shape = 's32[2]{0}', space=sflag, size = 0x8, scoped, tag = 'scoped memory for softmax_head_forward.1']
    #allocation4 [shape = 's32[2]{0}', space=sflag, size = 0x8, scoped, tag = 'scoped memory for softmax_head_forward.1']
    #allocation5 [shape = 'u8[524288]{0}', space=vmem, size = 0x80000, scoped, tag = 'input window, operand 1']
    #allocation6 [shape = 's32[2]{0}', space=sflag, size = 0x8, scoped, tag = 'scoped memory for softmax_head_forward.1']
    #allocation7 [shape = 'u8[16384]{0}', space=vmem, size = 0x4000, scoped, tag = 'output window, operand 0']
    %8 = vsyncpa [#allocation3], 0
    %9 = vsyncpa [#allocation6], 0
    %s10 = scalar_lea.sflag [#allocation6], 1
    %11 = vsyncpa %s10, 0
    %12 = vsyncpa [#allocation4], 0
    %s13 = scalar_lea.sflag [#allocation4], 1
    %14 = vsyncpa %s13, 0
    loop: start=0, step=1, limit=4
    $region2: #{softmax_head_forward.1} parent=1 // loop_pre_header
      _
    $region3: #{softmax_head_forward.1} parent=1 // loop_header
      %s16 = sphi 0, %s20
      %p17 = scmp.ge.s32.totalorder %s16, 4
      %s23 = sphi 0, %s35
      %s24 = sphi 0, %s31
      %s25 = sphi 0, %s23
      %s26 = sphi 0, %s24
      %s27 = sphi 0, %s25
      %s28 = sphi 0, %s26
      %s38 = sphi 0, %s40
      %s41 = sphi 0, %s38
      %s42 = sphi 0, %s41
      %s58 = sphi 0, %s42
      %s64 = sphi 0, %s66
      %s67 = sphi 0, %s64
      %s68 = sphi 0, %s67
      %s84 = sphi 0, %s68
      %s90 = sphi 0, %s92
      %s93 = sphi 0, %s90
      %s94 = sphi 0, %s93
      %s110 = sphi 0, %s94
      %s118 = sphi 0, %s120
      %s121 = sphi 0, %s118
      %s122 = sphi 0, %s121
      %s138 = sphi 0, %s122
    $region4: #{softmax_head_forward.1} parent=1 // loop_header_branch
      %19 = sbr.rel (%p17) target = $region8
    $region5: #{softmax_head_forward.1} parent=1 // loop_body
      %s21 = ssub.s32 %s16, 1
      %s22 = ssub.s32 %s16, 2
      %s29 = sadd.s32 1, %s24
      %p30 = scmp.ge.s32.totalorder %s29, 2
      %s31 = scalar_select %p30, 0, %s29
      %s32 = sadd.s32 1, %s23
      %s33 = scalar_select %p30, %s32, %s23
      %p34 = scmp.ge.s32.totalorder %s33, 1
      %s35 = scalar_select %p34, 0, %s33
      %s36 = ssub.s32 %s23, %s35
      %p37 = scmp.eq.s32.totalorder %s36, 0
      %s39 = sadd.s32 %s38, 1
      %s40 = scalar_select %p37, %s38, %s39
      %p43 = pneg %p37
      %p44 = scmp.eq.s32.totalorder %s16, 1
      %p45 = por %p43, %p44
      %p46 = scmp.ne.s32.totalorder %s38, %s41
      %p47 = scmp.eq.s32.totalorder %s16, 0
      %p48 = por %p46, %p47
      %p49 = scmp.ne.s32.totalorder %s38, %s41
      %p50 = scmp.eq.s32.totalorder %s21, 1
      %p51 = por %p49, %p50
      %p52 = scmp.ne.s32.totalorder %s41, %s42
      %p53 = scmp.eq.s32.totalorder %s21, 0
      %p54 = por %p52, %p53
      %p55 = scmp.ne.s32.totalorder %s41, %s42
      %p56 = scmp.eq.s32.totalorder %s22, 1
      %p57 = por %p55, %p56
      %p59 = scmp.ne.s32.totalorder %s42, %s58
      %p60 = scmp.eq.s32.totalorder %s22, 0
      %p61 = por %p59, %p60
      %s62 = ssub.s32 %s24, %s31
      %p63 = scmp.eq.s32.totalorder %s62, 0
      %s65 = sadd.s32 %s64, 1
      %s66 = scalar_select %p63, %s64, %s65
      %p69 = pneg %p63
      %p70 = scmp.eq.s32.totalorder %s16, 1
      %p71 = por %p69, %p70
      %p72 = scmp.ne.s32.totalorder %s64, %s67
      %p73 = scmp.eq.s32.totalorder %s16, 0
      %p74 = por %p72, %p73
      %p75 = scmp.ne.s32.totalorder %s64, %s67
      %p76 = scmp.eq.s32.totalorder %s21, 1
      %p77 = por %p75, %p76
      %p78 = scmp.ne.s32.totalorder %s67, %s68
      %p79 = scmp.eq.s32.totalorder %s21, 0
      %p80 = por %p78, %p79
      %p81 = scmp.ne.s32.totalorder %s67, %s68
      %p82 = scmp.eq.s32.totalorder %s22, 1
      %p83 = por %p81, %p82
      %p85 = scmp.ne.s32.totalorder %s68, %s84
      %p86 = scmp.eq.s32.totalorder %s22, 0
      %p87 = por %p85, %p86
      %s88 = ssub.s32 %s24, %s31
      %p89 = scmp.eq.s32.totalorder %s88, 0
      %s91 = sadd.s32 %s90, 1
      %s92 = scalar_select %p89, %s90, %s91
      %p95 = pneg %p89
      %p96 = scmp.eq.s32.totalorder %s16, 1
      %p97 = por %p95, %p96
      %p98 = scmp.ne.s32.totalorder %s90, %s93
      %p99 = scmp.eq.s32.totalorder %s16, 0
      %p100 = por %p98, %p99
      %p101 = scmp.ne.s32.totalorder %s90, %s93
      %p102 = scmp.eq.s32.totalorder %s21, 1
      %p103 = por %p101, %p102
      %p104 = scmp.ne.s32.totalorder %s93, %s94
      %p105 = scmp.eq.s32.totalorder %s21, 0
      %p106 = por %p104, %p105
      %p107 = scmp.ne.s32.totalorder %s93, %s94
      %p108 = scmp.eq.s32.totalorder %s22, 1
      %p109 = por %p107, %p108
      %p111 = scmp.ne.s32.totalorder %s94, %s110
      %p112 = scmp.eq.s32.totalorder %s22, 0
      %p113 = por %p111, %p112
      %s114 = ssub.s32 %s23, %s35
      %s115 = ssub.s32 %s24, %s31
      %s116 = sor.u32 %s114, %s115
      %p117 = scmp.eq.s32.totalorder %s116, 0
      %s119 = sadd.s32 %s118, 1
      %s120 = scalar_select %p117, %s118, %s119
      %p123 = pneg %p117
      %p124 = scmp.eq.s32.totalorder %s16, 1
      %p125 = por %p123, %p124
      %p126 = scmp.ne.s32.totalorder %s118, %s121
      %p127 = scmp.eq.s32.totalorder %s16, 0
      %p128 = por %p126, %p127
      %p129 = scmp.ne.s32.totalorder %s118, %s121
      %p130 = scmp.eq.s32.totalorder %s21, 1
      %p131 = por %p129, %p130
      %p132 = scmp.ne.s32.totalorder %s121, %s122
      %p133 = scmp.eq.s32.totalorder %s21, 0
      %p134 = por %p132, %p133
      %p135 = scmp.ne.s32.totalorder %s121, %s122
      %p136 = scmp.eq.s32.totalorder %s22, 1
      %p137 = por %p135, %p136
      %p139 = scmp.ne.s32.totalorder %s122, %s138
      %p140 = scmp.eq.s32.totalorder %s22, 0
      %p141 = por %p139, %p140
      %p142 = scmp.le.s32.totalorder 1, %s16
      %p143 = scmp.lt.s32.totalorder %s16, 3
      %p144 = pnand %p142, %p143
      %p145 = pneg %p144
      // Predicated region
      $region9: #{softmax_head_forward.1} parent=5 // pred_check
        _
      $region10: #{softmax_head_forward.1} parent=5 // pred_check_branch
        %147 = sbr.rel (%p144) target = $region12
      $region11: #{softmax_head_forward.1} parent=5 // pred_region
        %s148 = ssub.s32 %s16, 1
        // Predicated region
        $region13: #{softmax_head_forward.1} parent=11 // pred_check
          %p149 = pneg %p54
        $region14: #{softmax_head_forward.1} parent=11 // pred_check_branch
          %151 = sbr.rel (%p149) target = $region16
        $region15: #{softmax_head_forward.1} parent=11 // pred_region
          %s153 = ssub.s32 256, 256
          %154 = vsyncadd [#allocation3], %s153
          %s155 = smul.addr %s25, 2
          %s156 = smul.addr %s155, 128
          %s157 = scalar_lea.hbm %s0, %s156
          %s159 = sshll.u32 [#allocation2], 4
          %s160 = int_to_ptr.vmem [resolvable:$true] %s159
          %162 = dma.hbm_to_vmem [thread:$0]  %s157, 256, %s160, [#allocation3]
        $region16: #{softmax_head_forward.1} parent=11 // pred_fallthru
          _
      $region12: #{softmax_head_forward.1} parent=5 // pred_fallthru
        _
      %p163 = scmp.lt.s32.totalorder %s16, 2
      // Predicated region
      $region17: #{softmax_head_forward.1} parent=5 // pred_check
        %p164 = pneg %p163
      $region18: #{softmax_head_forward.1} parent=5 // pred_check_branch
        %166 = sbr.rel (%p164) target = $region20
      $region19: #{softmax_head_forward.1} parent=5 // pred_region
        // Predicated region
        $region21: #{softmax_head_forward.1} parent=19 // pred_check
          %p167 = pneg %p74
        $region22: #{softmax_head_forward.1} parent=19 // pred_check_branch
          %169 = sbr.rel (%p167) target = $region24
        $region23: #{softmax_head_forward.1} parent=19 // pred_region
          %s170 = sand.u32 %s64, 1
          %s171 = scalar_lea.sflag [#allocation6], %s170
          %s172 = sand.u32 %s64, 1
          %s173 = smul.addr %s172, 512
          %s174 = scalar_lea.vmem [#allocation5], %s173
          %s175 = smul.u32 32, %s24
          %s177 = ssub.s32 8192, 8192
          %178 = vsyncadd %s171, %s177
          %s179 = smul.addr %s175, 2
          %s180 = smul.addr %s179, 128
          %s181 = scalar_lea.hbm %s1, %s180
          %s182 = sshll.u32 %s174, 4
          %s183 = int_to_ptr.vmem [resolvable:$true] %s182
          %188 = dma.hbm_to_vmem [thread:$0]  %s181, 8192, %s183, %s171, 256, 256, 16
        $region24: #{softmax_head_forward.1} parent=19 // pred_fallthru
          _
        // Predicated region
        $region25: #{softmax_head_forward.1} parent=19 // pred_check
          %p189 = pneg %p100
        $region26: #{softmax_head_forward.1} parent=19 // pred_check_branch
          %191 = sbr.rel (%p189) target = $region28
        $region27: #{softmax_head_forward.1} parent=19 // pred_region
          %s192 = smul.u32 2, %s24
          %p193 = scmp.lt.s32.totalorder %s192, 3
          %s194 = scalar_select %p193, %s192, 3
          %s195 = scalar_lea.vmem %s2, %s194
          %s196 = smul.u32 2, %s24
        $region28: #{softmax_head_forward.1} parent=19 // pred_fallthru
          _
      $region20: #{softmax_head_forward.1} parent=5 // pred_fallthru
        _
      %p197 = scmp.le.s32.totalorder 1, %s16
      %p198 = scmp.lt.s32.totalorder %s16, 3
      %p199 = pnand %p197, %p198
      %p200 = pneg %p199
      // Predicated region
      $region29: #{softmax_head_forward.1} parent=5 // pred_check
        _
      $region30: #{softmax_head_forward.1} parent=5 // pred_check_branch
        %202 = sbr.rel (%p199) target = $region32
      $region31: #{softmax_head_forward.1} parent=5 // pred_region
        %s203 = ssub.s32 %s16, 1
        // Predicated region
        $region33: #{softmax_head_forward.1} parent=31 // pred_check
          %p204 = pneg %p54
        $region34: #{softmax_head_forward.1} parent=31 // pred_check_branch
          %206 = sbr.rel (%p204) target = $region36
        $region35: #{softmax_head_forward.1} parent=31 // pred_region
          %207 = dma.done [#allocation3], 256
        $region36: #{softmax_head_forward.1} parent=31 // pred_fallthru
          _
        %s208 = sand.u32 %s67, 1
        %s209 = scalar_lea.sflag [#allocation6], %s208
        %s210 = sand.u32 %s67, 1
        %s211 = smul.addr %s210, 512
        %s212 = scalar_lea.vmem [#allocation5], %s211
        // Predicated region
        $region37: #{softmax_head_forward.1} parent=31 // pred_check
          %p213 = pneg %p80
        $region38: #{softmax_head_forward.1} parent=31 // pred_check_branch
          %215 = sbr.rel (%p213) target = $region40
        $region39: #{softmax_head_forward.1} parent=31 // pred_region
          %216 = dma.done %s209, 8192
        $region40: #{softmax_head_forward.1} parent=31 // pred_fallthru
          _
        %p217 = pneg %p54
        %p218 = pneg %p51
        %s219 = sand.u32 %s67, 1
        %s220 = scalar_lea.sflag [#allocation6], %s219
        %s221 = sand.u32 %s67, 1
        %s222 = smul.addr %s221, 512
        %s223 = scalar_lea.vmem [#allocation5], %s222
        %p224 = pneg %p80
        %p225 = pneg %p77
        %s226 = smul.u32 2, %s26
        %p227 = scmp.lt.s32.totalorder %s226, 3
        %s228 = scalar_select %p227, %s226, 3
        %s229 = scalar_lea.vmem %s2, %s228
        %p230 = pneg %p106
        %p231 = pneg %p103
        %p232 = pneg %p134
        %p233 = pneg %p131
        %s234 = sand.u32 %s121, 1
        %s235 = scalar_lea.sflag [#allocation4], %s234
        %s236 = sand.u32 %s121, 1
        %s237 = smul.addr %s236, 16
        %s238 = scalar_lea.vmem [#allocation7], %s237
        %s239 = smul.u32 32, %s26
        %s240 = smul.u32 2, %s26
        %p241 = scmp.lt.s32.totalorder %s240, 3
        %s242 = scalar_select %p241, %s240, 3
        %s243 = scalar_lea.vmem %s2, %s242
        %s244 = smul.u32 2, %s26
        %s245 = smul.u32 2, %s26
        %v246 = vld [vmem:[#allocation2] sm:$0xff]
        %v247 = vld [vmem:[#allocation2 + $0x8] sm:$0xff]
        %v248 = vld [vmem:[%s212] sm:$0xff]
        %v249 = vld [vmem:[%s212 + $0x8] sm:$0xff]
        %v250 = vld [vmem:[%s212 + $0x10] sm:$0xff]
        %v251 = vld [vmem:[%s212 + $0x18] sm:$0xff]
        %v252 = vld [vmem:[%s212 + $0x20] sm:$0xff]
        %v253 = vld [vmem:[%s212 + $0x28] sm:$0xff]
        %v254 = vld [vmem:[%s212 + $0x30] sm:$0xff]
        %v255 = vld [vmem:[%s212 + $0x38] sm:$0xff]
        %v256 = vld [vmem:[%s212 + $0x40] sm:$0xff]
        %v257 = vld [vmem:[%s212 + $0x48] sm:$0xff]
        %v258 = vld [vmem:[%s212 + $0x50] sm:$0xff]
        %v259 = vld [vmem:[%s212 + $0x58] sm:$0xff]
        %v260 = vld [vmem:[%s212 + $0x60] sm:$0xff]
        %v261 = vld [vmem:[%s212 + $0x68] sm:$0xff]
        %v262 = vld [vmem:[%s212 + $0x70] sm:$0xff]
        %v263 = vld [vmem:[%s212 + $0x78] sm:$0xff]
        %v264 = vld [vmem:[%s212 + $0x80] sm:$0xff]
        %v265 = vld [vmem:[%s212 + $0x88] sm:$0xff]
        %v266 = vld [vmem:[%s212 + $0x90] sm:$0xff]
        %v267 = vld [vmem:[%s212 + $0x98] sm:$0xff]
        %v268 = vld [vmem:[%s212 + $0xa0] sm:$0xff]
        %v269 = vld [vmem:[%s212 + $0xa8] sm:$0xff]
        %v270 = vld [vmem:[%s212 + $0xb0] sm:$0xff]
        %v271 = vld [vmem:[%s212 + $0xb8] sm:$0xff]
        %v272 = vld [vmem:[%s212 + $0xc0] sm:$0xff]
        %v273 = vld [vmem:[%s212 + $0xc8] sm:$0xff]
        %v274 = vld [vmem:[%s212 + $0xd0] sm:$0xff]
        %v275 = vld [vmem:[%s212 + $0xd8] sm:$0xff]
        %v276 = vld [vmem:[%s212 + $0xe0] sm:$0xff]
        %v277 = vld [vmem:[%s212 + $0xe8] sm:$0xff]
        %v278 = vld [vmem:[%s212 + $0xf0] sm:$0xff]
        %v279 = vld [vmem:[%s212 + $0xf8] sm:$0xff]
        %v280 = vld [vmem:[%s212 + $0x100] sm:$0xff]
        %v281 = vld [vmem:[%s212 + $0x108] sm:$0xff]
        %v282 = vld [vmem:[%s212 + $0x110] sm:$0xff]
        %v283 = vld [vmem:[%s212 + $0x118] sm:$0xff]
        %v284 = vld [vmem:[%s212 + $0x120] sm:$0xff]
        %v285 = vld [vmem:[%s212 + $0x128] sm:$0xff]
        %v286 = vld [vmem:[%s212 + $0x130] sm:$0xff]
        %v287 = vld [vmem:[%s212 + $0x138] sm:$0xff]
        %v288 = vld [vmem:[%s212 + $0x140] sm:$0xff]
        %v289 = vld [vmem:[%s212 + $0x148] sm:$0xff]
        %v290 = vld [vmem:[%s212 + $0x150] sm:$0xff]
        %v291 = vld [vmem:[%s212 + $0x158] sm:$0xff]
        %v292 = vld [vmem:[%s212 + $0x160] sm:$0xff]
        %v293 = vld [vmem:[%s212 + $0x168] sm:$0xff]
        %v294 = vld [vmem:[%s212 + $0x170] sm:$0xff]
        %v295 = vld [vmem:[%s212 + $0x178] sm:$0xff]
        %v296 = vld [vmem:[%s212 + $0x180] sm:$0xff]
        %v297 = vld [vmem:[%s212 + $0x188] sm:$0xff]
        %v298 = vld [vmem:[%s212 + $0x190] sm:$0xff]
        %v299 = vld [vmem:[%s212 + $0x198] sm:$0xff]
        %v300 = vld [vmem:[%s212 + $0x1a0] sm:$0xff]
        %v301 = vld [vmem:[%s212 + $0x1a8] sm:$0xff]
        %v302 = vld [vmem:[%s212 + $0x1b0] sm:$0xff]
        %v303 = vld [vmem:[%s212 + $0x1b8] sm:$0xff]
        %v304 = vld [vmem:[%s212 + $0x1c0] sm:$0xff]
        %v305 = vld [vmem:[%s212 + $0x1c8] sm:$0xff]
        %v306 = vld [vmem:[%s212 + $0x1d0] sm:$0xff]
        %v307 = vld [vmem:[%s212 + $0x1d8] sm:$0xff]
        %v308 = vld [vmem:[%s212 + $0x1e0] sm:$0xff]
        %v309 = vld [vmem:[%s212 + $0x1e8] sm:$0xff]
        %v310 = vld [vmem:[%s212 + $0x1f0] sm:$0xff]
        %v311 = vld [vmem:[%s212 + $0x1f8] sm:$0xff]
        %v312 = vld [vmem:[%s243] sm:$0x3]
        %v314 = vlaneseq
        %v315 = vshrl.u32 %v314, 7
        %v316 = vsub.s32 0, %v315
        %v317 = vrot.slane %v312, %v316
        %v318 = vlaneseq
        %v319 = vshrl.u32 %v318, 7
        %v320 = vsub.s32 1, %v319
        %v321 = vrot.slane %v312, %v320
        %324 = vmatprep.subr.mxu0 %v249
        %325 = vmatpush1.xpose.msra.mxu0 %v248
        %326 = vmatprep.subr.mxu0 %v251
        %327 = vmatpush1.xpose.msra.mxu0 %v250
        %328 = vmatprep.subr.mxu0 %v253
        %329 = vmatpush1.xpose.msra.mxu0 %v252
        %330 = vmatprep.subr.mxu0 %v255
        %331 = vmatpush1.xpose.msra.mxu0 %v254
        %332 = vmatprep.subr.mxu0 %v257
        %333 = vmatpush1.xpose.msra.mxu0 %v256
        %334 = vmatprep.subr.mxu0 %v259
        %335 = vmatpush1.xpose.msra.mxu0 %v258
        %336 = vmatprep.subr.mxu0 %v261
        %337 = vmatpush1.xpose.msra.mxu0 %v260
        %338 = vmatprep.subr.mxu0 %v263
        %339 = vmatpush1.xpose.msra.mxu0 %v262
        %340 = vmatprep.subr.mxu0 %v265
        %341 = vmatpush1.xpose.msra.mxu0 %v264
        %342 = vmatprep.subr.mxu0 %v267
        %343 = vmatpush1.xpose.msra.mxu0 %v266
        %344 = vmatprep.subr.mxu0 %v269
        %345 = vmatpush1.xpose.msra.mxu0 %v268
        %346 = vmatprep.subr.mxu0 %v271
        %347 = vmatpush1.xpose.msra.mxu0 %v270
        %348 = vmatprep.subr.mxu0 %v273
        %349 = vmatpush1.xpose.msra.mxu0 %v272
        %350 = vmatprep.subr.mxu0 %v275
        %351 = vmatpush1.xpose.msra.mxu0 %v274
        %352 = vmatprep.subr.mxu0 %v277
        %353 = vmatpush1.xpose.msra.mxu0 %v276
        %354 = vmatprep.subr.mxu0 %v279
        %355 = vmatpush1.xpose.msra.mxu0 %v278
        %356 = vmatprep.subr.mxu0 %v281
        %357 = vmatpush1.xpose.msra.mxu0 %v280
        %358 = vmatprep.subr.mxu0 %v283
        %359 = vmatpush1.xpose.msra.mxu0 %v282
        %360 = vmatprep.subr.mxu0 %v285
        %361 = vmatpush1.xpose.msra.mxu0 %v284
        %362 = vmatprep.subr.mxu0 %v287
        %363 = vmatpush1.xpose.msra.mxu0 %v286
        %364 = vmatprep.subr.mxu0 %v289
        %365 = vmatpush1.xpose.msra.mxu0 %v288
        %366 = vmatprep.subr.mxu0 %v291
        %367 = vmatpush1.xpose.msra.mxu0 %v290
        %368 = vmatprep.subr.mxu0 %v293
        %369 = vmatpush1.xpose.msra.mxu0 %v292
        %370 = vmatprep.subr.mxu0 %v295
        %371 = vmatpush1.xpose.msra.mxu0 %v294
        %372 = vmatprep.subr.mxu0 %v297
        %373 = vmatpush1.xpose.msra.mxu0 %v296
        %374 = vmatprep.subr.mxu0 %v299
        %375 = vmatpush1.xpose.msra.mxu0 %v298
        %376 = vmatprep.subr.mxu0 %v301
        %377 = vmatpush1.xpose.msra.mxu0 %v300
        %378 = vmatprep.subr.mxu0 %v303
        %379 = vmatpush1.xpose.msra.mxu0 %v302
        %380 = vmatprep.subr.mxu0 %v305
        %381 = vmatpush1.xpose.msra.mxu0 %v304
        %382 = vmatprep.subr.mxu0 %v307
        %383 = vmatpush1.xpose.msra.mxu0 %v306
        %384 = vmatprep.subr.mxu0 %v309
        %385 = vmatpush1.xpose.msra.mxu0 %v308
        %386 = vmatprep.subr.mxu0 %v311
        %387 = vmatpush1.xpose.msra.mxu0 %v310
        %388 = vmatprep.mubr.f32.mxu0 %v247
        %389 = vmatmul.mubr.f32.gmra.mrb[0].mxu0 %v246
        %v390 = vpop.f32.mrb[0].mxu0
        %v391 = vadd.f32 %v317, %v390
        %v392 = vpop.f32.mrb[0].mxu0
        %v393 = vadd.f32 %v321, %v392
        %394 = vdwg.mxu0
        %395 = vst [vmem:[%s238] sm:$0xff] %v391
        %396 = vst [vmem:[%s238 + $0x8] sm:$0xff] %v393
        %s397 = sand.u32 %s121, 1
        %s398 = scalar_lea.sflag [#allocation4], %s397
        %s399 = sand.u32 %s121, 1
        %s400 = smul.addr %s399, 16
        %s401 = scalar_lea.vmem [#allocation7], %s400
        // Predicated region
        $region41: #{softmax_head_forward.1} parent=31 // pred_check
          %p402 = pneg %p131
        $region42: #{softmax_head_forward.1} parent=31 // pred_check_branch
          %404 = sbr.rel (%p402) target = $region44
        $region43: #{softmax_head_forward.1} parent=31 // pred_region
          %s405 = smul.u32 2, %s26
          %s407 = ssub.s32 256, 256
          %408 = vsyncadd %s398, %s407
          %s409 = smul.addr %s25, 4
          %s410 = sadd.s32 %s405, %s409
          %s411 = smul.addr %s410, 128
          %s412 = scalar_lea.hbm %s3, %s411
          %s414 = sshll.u32 %s401, 4
          %s415 = int_to_ptr.vmem [resolvable:$true] %s414
          %417 = dma.vmem_to_hbm [thread:$0]  %s415, 256, %s412, %s398
        $region44: #{softmax_head_forward.1} parent=31 // pred_fallthru
          _
      $region32: #{softmax_head_forward.1} parent=5 // pred_fallthru
        _
      %p418 = scmp.le.s32.totalorder 2, %s16
      // Predicated region
      $region45: #{softmax_head_forward.1} parent=5 // pred_check
        %p419 = pneg %p418
      $region46: #{softmax_head_forward.1} parent=5 // pred_check_branch
        %421 = sbr.rel (%p419) target = $region48
      $region47: #{softmax_head_forward.1} parent=5 // pred_region
        %s422 = ssub.s32 %s16, 2
        // Predicated region
        $region49: #{softmax_head_forward.1} parent=47 // pred_check
          %p423 = pneg %p137
        $region50: #{softmax_head_forward.1} parent=47 // pred_check_branch
          %425 = sbr.rel (%p423) target = $region52
        $region51: #{softmax_head_forward.1} parent=47 // pred_region
          %s426 = sand.u32 %s122, 1
          %s427 = scalar_lea.sflag [#allocation4], %s426
          %s428 = sand.u32 %s122, 1
          %s429 = smul.addr %s428, 16
          %s430 = scalar_lea.vmem [#allocation7], %s429
          %431 = dma.done %s427, 256
        $region52: #{softmax_head_forward.1} parent=47 // pred_fallthru
          _
      $region48: #{softmax_head_forward.1} parent=5 // pred_fallthru
        _
    $region6: #{softmax_head_forward.1} parent=1 // loop_footer
      %s20 = sadd.s32 1, %s16
    $region7: #{softmax_head_forward.1} parent=1 // loop_footer_branch
      %15 = sbr.rel target = $region3
    $region8: #{softmax_head_forward.1} parent=1 // loop_exit
      _
    %432 = vsyncpa [#allocation3], 1
    %s433 = scalar_lea.sflag [#allocation3], 1
    %434 = vsyncpa %s433, 1
    %435 = vsyncpa [#allocation6], 1
    %s436 = scalar_lea.sflag [#allocation6], 1
    %437 = vsyncpa %s436, 1
    %438 = vsyncpa [#allocation4], 1
    %s439 = scalar_lea.sflag [#allocation4], 1
    %440 = vsyncpa %s439, 1

</llo_original>
